<compile_context>
chip_gen: v7x
topology: tpu7x:2x2x1
jax: 0.10.0
libtpu: 0.0.40
codegen_flags: <defaults>
</compile_context>

<pallas_src>
import functools

import jax
import jax.numpy as jnp
from jax import lax
from jax.experimental import pallas as pl
from jax.experimental.pallas import tpu as pltpu

_EPS = 1e-12  # F.normalize default eps


def _round_up(a, b):
    return ((a + b - 1) // b) * b


def _normed_linear_kernel(x_ref, w_ref, winv_ref, o_ref, acc_ref, xssq_ref):
    k = pl.program_id(2)

    @pl.when(k == 0)
    def _():
        acc_ref[...] = jnp.zeros_like(acc_ref)
        xssq_ref[...] = jnp.zeros_like(xssq_ref)

    x = x_ref[...]  # native dtype -> MXU
    w = w_ref[...]

    # Un-normalized partial matmul, f32 accumulation on the MXU.
    acc_ref[...] += jnp.dot(x, w, preferred_element_type=jnp.float32)

    # Partial row sum-of-squares of x (f32), accumulated over K tiles.
    # VPU + XLU work that hides under the MXU; independent per (i, j) tile.
    x32 = x.astype(jnp.float32)
    xssq_ref[...] += jnp.sum(x32 * x32, axis=1, keepdims=True)

    @pl.when(k == pl.num_programs(2) - 1)
    def _():
        # 1 / max(||x_row||, eps) == rsqrt(max(sumsq, eps^2))
        x_inv = lax.rsqrt(jnp.maximum(xssq_ref[...], _EPS * _EPS))  # (tm, 1)
        o_ref[...] = (acc_ref[...] * x_inv * winv_ref[...]).astype(o_ref.dtype)


@functools.partial(jax.jit, static_argnames=("tm", "tn", "tk"))
def normed_linear(x, weight, *, tm=256, tn=256, tk=512):
    n, in_f = x.shape
    in_f2, out_f = weight.shape
    assert in_f == in_f2

    # Weight-column inverse norms are constant w.r.t. x: one cheap XLA
    # reduction outside the kernel instead of re-reducing W every grid step.
    w32 = weight.astype(jnp.float32)
    w_col_ssq = jnp.sum(w32 * w32, axis=0, keepdims=True)      # (1, out_f)
    w_inv = lax.rsqrt(jnp.maximum(w_col_ssq, _EPS * _EPS))     # 1/max(||w_col||, eps)

    # Clamp tiles to the (padded) problem, keeping (8, 128) alignment.
    tm = min(tm, _round_up(n, 8))
    tn = min(tn, _round_up(out_f, 128))
    tk = min(tk, _round_up(in_f, 128))
    m_pad = _round_up(n, tm)
    n_pad = _round_up(out_f, tn)
    k_pad = _round_up(in_f, tk)

    # Zero padding is semantics-preserving: it contributes nothing to the dot
    # products or sums of squares, and padded rows/cols are sliced off below.
    x_p = jnp.pad(x, ((0, m_pad - n), (0, k_pad - in_f)))
    w_p = jnp.pad(weight, ((0, k_pad - in_f), (0, n_pad - out_f)))
    winv_p = jnp.pad(w_inv, ((0, 0), (0, n_pad - out_f)))

    grid = (m_pad // tm, n_pad // tn, k_pad // tk)

    out_p = pl.pallas_call(
        _normed_linear_kernel,
        out_shape=jax.ShapeDtypeStruct((m_pad, n_pad), x.dtype),
        grid_spec=pltpu.PrefetchScalarGridSpec(
            num_scalar_prefetch=0,
            grid=grid,
            in_specs=[
                pl.BlockSpec((tm, tk), lambda i, j, k: (i, k)),   # x tile
                pl.BlockSpec((tk, tn), lambda i, j, k: (k, j)),   # w tile
                pl.BlockSpec((1, tn), lambda i, j, k: (0, j)),    # w col inv-norms
            ],
            out_specs=pl.BlockSpec((tm, tn), lambda i, j, k: (i, j)),
            scratch_shapes=[
                pltpu.VMEM((tm, tn), jnp.float32),   # matmul accumulator
                pltpu.VMEM((tm, 1), jnp.float32),    # x row sum-of-squares
            ],
        ),
        compiler_params=pltpu.CompilerParams(
            dimension_semantics=("parallel", "parallel", "arbitrary"),
            vmem_limit_bytes=64 * 1024 * 1024,
        ),
    )(x_p, w_p, winv_p)

    return out_p[:n, :out_f]


def init_normed_linear_weight(key, in_features, out_features):
    # Mirror: torch.Tensor(in, out).uniform_(-1, 1).renorm_(2, 1, 1e-5).mul_(1e5)
    w = jax.random.uniform(key, (in_features, out_features),
                           minval=-1.0, maxval=1.0, dtype=jnp.float32)
    col_norm = jnp.sqrt(jnp.sum(w * w, axis=0, keepdims=True))
    maxnorm = 1e-5
    scale = jnp.where(col_norm > maxnorm, maxnorm / (col_norm + 1e-7), 1.0)
    return w * scale * 1e5


def normed_linear_ref(x, weight):
    xn = x / jnp.maximum(jnp.linalg.norm(x, axis=1, keepdims=True), _EPS)
    wn = weight / jnp.maximum(jnp.linalg.norm(weight, axis=0, keepdims=True), _EPS)
    return xn @ wn


if __name__ == "__main__":
    key = jax.random.PRNGKey(0)
    k_x, k_w = jax.random.split(key)

    batch = 8
    in_features = 32
    out_features = 16

    x = jax.random.normal(k_x, (batch, in_features), dtype=jnp.float32)
    weight = init_normed_linear_weight(k_w, in_features, out_features)

    out = normed_linear(x, weight)
    out = jax.block_until_ready(out)

    ref = normed_linear_ref(x, weight)
    assert out.shape == (batch, out_features)
    assert jnp.allclose(out, ref, atol=1e-5, rtol=1e-5), "mismatch vs reference"

    print("KERNEL_OK")
</pallas_src>

<mosaic_0001>
module attributes {stable_mosaic.version = 11 : i64} {
  func.func @_normed_linear_kernel(%arg0: i32, %arg1: i32, %arg2: i32, %arg3: memref<8x128xf32, #tpu.memory_space<vmem>>, %arg4: memref<128x128xf32, #tpu.memory_space<vmem>>, %arg5: memref<1x128xf32, #tpu.memory_space<vmem>>, %arg6: memref<8x128xf32, #tpu.memory_space<vmem>>, %arg7: memref<8x128xf32, #tpu.memory_space<vmem>>, %arg8: memref<8x1xf32, #tpu.memory_space<vmem>>) attributes {dimension_semantics = [#tpu.dimension_semantics<parallel>, #tpu.dimension_semantics<parallel>, #tpu.dimension_semantics<arbitrary>], iteration_bounds = array<i64: 1, 1, 1>, scalar_prefetch = 0 : i64, scratch_operands = 2 : i64, tpu.core_type = #tpu.core_type<tc>, window_params = [{transform_indices = @transform_0, window_bounds = array<i64: 8, 128>}, {transform_indices = @transform_1, window_bounds = array<i64: 128, 128>}, {transform_indices = @transform_2, window_bounds = array<i64: 1, 128>}, {transform_indices = @transform_3, window_bounds = array<i64: 8, 128>}]} {
    %c0_i32 = arith.constant 0 : i32
    %0 = arith.cmpi eq, %arg2, %c0_i32 : i32
    %1 = arith.extui %0 : i1 to i32
    %c0_i32_0 = arith.constant 0 : i32
    %2 = arith.cmpi ne, %1, %c0_i32_0 : i32
    scf.if %2 {
      %cst_15 = arith.constant 0.000000e+00 : f32
      %18 = vector.broadcast %cst_15 : f32 to vector<8x128xf32>
      %c0_16 = arith.constant 0 : index
      %c0_17 = arith.constant 0 : index
      %19 = vector.load %arg7[%c0_16, %c0_17] : memref<8x128xf32, #tpu.memory_space<vmem>>, vector<8x128xf32>
      tpu.vector_store %arg7[%c0_16, %c0_17], %18 {strides = array<i32>} : memref<8x128xf32, #tpu.memory_space<vmem>>, vector<8x128xf32>,
      %cst_18 = arith.constant 0.000000e+00 : f32
      %20 = vector.broadcast %cst_18 : f32 to vector<8x1xf32>
      %c0_19 = arith.constant 0 : index
      %c0_20 = arith.constant 0 : index
      %21 = vector.load %arg8[%c0_19, %c0_20] : memref<8x1xf32, #tpu.memory_space<vmem>>, vector<8x1xf32>
      tpu.vector_store %arg8[%c0_19, %c0_20], %20 {strides = array<i32>} : memref<8x1xf32, #tpu.memory_space<vmem>>, vector<8x1xf32>,
    } else {
    }
    %c0 = arith.constant 0 : index
    %c0_1 = arith.constant 0 : index
    %3 = vector.load %arg3[%c0, %c0_1] : memref<8x128xf32, #tpu.memory_space<vmem>>, vector<8x128xf32>
    %c0_2 = arith.constant 0 : index
    %c0_3 = arith.constant 0 : index
    %4 = vector.load %arg4[%c0_2, %c0_3] : memref<128x128xf32, #tpu.memory_space<vmem>>, vector<128x128xf32>
    %c0_4 = arith.constant 0 : index
    %c0_5 = arith.constant 0 : index
    %5 = vector.load %arg7[%c0_4, %c0_5] : memref<8x128xf32, #tpu.memory_space<vmem>>, vector<8x128xf32>
    %cst = arith.constant dense<0.000000e+00> : vector<8x128xf32>
    %6 = tpu.matmul %3, %4, %cst {dimension_numbers = #tpu.dot_dimension_numbers<[1], [0], [0], [1], [0, 0, 1, 1], [], []>} : vector<8x128xf32>, vector<128x128xf32>, vector<8x128xf32> -> vector<8x128xf32>
    %7 = arith.addf %5, %6 : vector<8x128xf32>
    %c0_6 = arith.constant 0 : index
    %c0_7 = arith.constant 0 : index
    %8 = vector.load %arg7[%c0_6, %c0_7] : memref<8x128xf32, #tpu.memory_space<vmem>>, vector<8x128xf32>
    tpu.vector_store %arg7[%c0_6, %c0_7], %7 {strides = array<i32>} : memref<8x128xf32, #tpu.memory_space<vmem>>, vector<8x128xf32>,
    %c0_8 = arith.constant 0 : index
    %c0_9 = arith.constant 0 : index
    %9 = vector.load %arg8[%c0_8, %c0_9] : memref<8x1xf32, #tpu.memory_space<vmem>>, vector<8x1xf32>
    %10 = arith.mulf %3, %3 : vector<8x128xf32>
    %cst_10 = arith.constant dense<0.000000e+00> : vector<8xf32>
    %11 = vector.multi_reduction <add>, %10, %cst_10 [1] : vector<8x128xf32> to vector<8xf32>
    %12 = vector.shape_cast %11 : vector<8xf32> to vector<8x1xf32>
    %13 = arith.addf %9, %12 : vector<8x1xf32>
    %c0_11 = arith.constant 0 : index
    %c0_12 = arith.constant 0 : index
    %14 = vector.load %arg8[%c0_11, %c0_12] : memref<8x1xf32, #tpu.memory_space<vmem>>, vector<8x1xf32>
    tpu.vector_store %arg8[%c0_11, %c0_12], %13 {strides = array<i32>} : memref<8x1xf32, #tpu.memory_space<vmem>>, vector<8x1xf32>,
    %c0_i32_13 = arith.constant 0 : i32
    %15 = arith.cmpi eq, %arg2, %c0_i32_13 : i32
    %16 = arith.extui %15 : i1 to i32
    %c0_i32_14 = arith.constant 0 : i32
    %17 = arith.cmpi ne, %16, %c0_i32_14 : i32
    scf.if %17 {
      %c0_15 = arith.constant 0 : index
      %c0_16 = arith.constant 0 : index
      %18 = vector.load %arg8[%c0_15, %c0_16] : memref<8x1xf32, #tpu.memory_space<vmem>>, vector<8x1xf32>
      %cst_17 = arith.constant 1.000000e-24 : f32
      %19 = vector.broadcast %cst_17 : f32 to vector<8x1xf32>
      %20 = arith.maximumf %18, %19 : vector<8x1xf32>
      %21 = math.rsqrt %20 : vector<8x1xf32>
      %c0_18 = arith.constant 0 : index
      %c0_19 = arith.constant 0 : index
      %22 = vector.load %arg7[%c0_18, %c0_19] : memref<8x128xf32, #tpu.memory_space<vmem>>, vector<8x128xf32>
      %23 = vector.broadcast %21 : vector<8x1xf32> to vector<8x128xf32>
      %24 = arith.mulf %22, %23 : vector<8x128xf32>
      %c0_20 = arith.constant 0 : index
      %c0_21 = arith.constant 0 : index
      %25 = vector.load %arg5[%c0_20, %c0_21] : memref<1x128xf32, #tpu.memory_space<vmem>>, vector<1x128xf32>
      %26 = vector.broadcast %25 : vector<1x128xf32> to vector<8x128xf32>
      %27 = arith.mulf %24, %26 : vector<8x128xf32>
      %c0_22 = arith.constant 0 : index
      %c0_23 = arith.constant 0 : index
      %28 = vector.load %arg6[%c0_22, %c0_23] : memref<8x128xf32, #tpu.memory_space<vmem>>, vector<8x128xf32>
      tpu.vector_store %arg6[%c0_22, %c0_23], %27 {strides = array<i32>} : memref<8x128xf32, #tpu.memory_space<vmem>>, vector<8x128xf32>,
    } else {
    }
    return
  }
  func.func @transform_0(%arg0: i32, %arg1: i32, %arg2: i32) -> (i32, i32) {
    %c0_i32 = arith.constant 0 : i32
    return %arg0, %arg2 : i32, i32
  }
  func.func @transform_1(%arg0: i32, %arg1: i32, %arg2: i32) -> (i32, i32) {
    %c0_i32 = arith.constant 0 : i32
    return %arg2, %arg1 : i32, i32
  }
  func.func @transform_2(%arg0: i32, %arg1: i32, %arg2: i32) -> (i32, i32) {
    %c0_i32 = arith.constant 0 : i32
    %c0_i32_0 = arith.constant 0 : i32
    return %c0_i32, %arg1 : i32, i32
  }
  func.func @transform_3(%arg0: i32, %arg1: i32, %arg2: i32) -> (i32, i32) {
    %c0_i32 = arith.constant 0 : i32
    return %arg0, %arg1 : i32, i32
  }
}

</mosaic_0001>

<llo_original>
// kernel: normed_linear.1
$region0: #{normed_linear.1}
  #allocation0 [shape = 'u32[]', space=smem, size = 0x4, offset = 0x4, fixed_abs, tag = 'smem constant byte address 0x4 - core index']
  #allocation1 [shape = 'u32[144,128]{1,0:T(1,128)}', space=vmem, size = 0x12000, scoped, tag = 'internal scratch']
  #allocation2 [shape = 'f32[8,128]{1,0:T(8,128)}', space=vmem, size = 0x1000, scoped, tag = 'scratch operand']
  #allocation3 [shape = 'f32[8,1]{1,0:T(8,128)}', space=vmem, size = 0x1000, scoped, tag = 'scratch operand']
  %s0 = inlined_call_operand.hbm [shape: f32[8,128], index: 0, kind: input, shape index: {}]
  %s1 = inlined_call_operand.hbm [shape: f32[128,128], index: 1, kind: input, shape index: {}]
  %s2 = inlined_call_operand.hbm [shape: f32[1,128], index: 2, kind: input, shape index: {}]
  %s3 = inlined_call_operand.hbm [shape: f32[8,128], index: 3, kind: output, shape index: {}]
  %s4 = sld [smem:[#allocation0]]
  $region42: #{normed_linear.1} parent=0
    _
  %s6 = ssub.s32 1, %s4
  %s7 = scalar_select 0, %s6, %s4
  $region1: #{normed_linear.1} parent=0
    #allocation4 [shape = 'u8[4096]{0}', space=vmem, size = 0x1000, scoped, tag = 'input window, operand 0, single buffered']
    #allocation5 [shape = 's32[1]{0}', space=sflag, size = 0x4, scoped, tag = 'scoped memory for normed_linear.1']
    #allocation6 [shape = 's32[1]{0}', space=sflag, size = 0x4, scoped, tag = 'scoped memory for normed_linear.1']
    #allocation7 [shape = 'u8[65536]{0}', space=vmem, size = 0x10000, scoped, tag = 'input window, operand 1, single buffered']
    #allocation8 [shape = 's32[1]{0}', space=sflag, size = 0x4, scoped, tag = 'scoped memory for normed_linear.1']
    #allocation9 [shape = 'u8[512]{0}', space=vmem, size = 0x400, scoped, tag = 'input window, operand 2, single buffered']
    #allocation10 [shape = 'u8[4096]{0}', space=vmem, size = 0x1000, scoped, tag = 'output window, operand 0, single buffered']
    %8 = vsyncpa [#allocation5], 0
    %9 = vsyncpa [#allocation8], 0
    %10 = vsyncpa [#allocation6], 0
    // Predicated region
    $region2: #{normed_linear.1} parent=1 // pred_check
      _
    $region3: #{normed_linear.1} parent=1 // pred_check_branch
      %12 = sbr.rel (0) target = $region5
    $region4: #{normed_linear.1} parent=1 // pred_region
      %s14 = ssub.s32 128, 128
      %15 = vsyncadd [#allocation5], %s14
      %s17 = sshll.u32 [#allocation4], 4
      %s18 = int_to_ptr.vmem [resolvable:$true] %s17
      %20 = dma.hbm_to_vmem [thread:$0]  %s0, 128, %s18, [#allocation5]
    $region5: #{normed_linear.1} parent=1 // pred_fallthru
      _
    // Predicated region
    $region6: #{normed_linear.1} parent=1 // pred_check
      _
    $region7: #{normed_linear.1} parent=1 // pred_check_branch
      %22 = sbr.rel (0) target = $region9
    $region8: #{normed_linear.1} parent=1 // pred_region
      %s24 = ssub.s32 2048, 2048
      %25 = vsyncadd [#allocation8], %s24
      %s26 = sshll.u32 [#allocation7], 4
      %s27 = int_to_ptr.vmem [resolvable:$true] %s26
      %32 = dma.hbm_to_vmem [thread:$0]  %s1, 2048, %s27, [#allocation8], 128, 128, 8
    $region9: #{normed_linear.1} parent=1 // pred_fallthru
      _
    // Predicated region
    $region10: #{normed_linear.1} parent=1 // pred_check
      _
    $region11: #{normed_linear.1} parent=1 // pred_check_branch
      %34 = sbr.rel (0) target = $region13
    $region12: #{normed_linear.1} parent=1 // pred_region
      %s36 = ssub.s32 16, 16
      %37 = vsyncadd [#allocation8], %s36
      %s39 = sshll.u32 [#allocation9], 4
      %s40 = int_to_ptr.vmem [resolvable:$true] %s39
      %42 = dma.hbm_to_vmem [thread:$0]  %s2, 16, %s40, [#allocation8]
    $region13: #{normed_linear.1} parent=1 // pred_fallthru
      _
    // Predicated region
    $region14: #{normed_linear.1} parent=1 // pred_check
      _
    $region15: #{normed_linear.1} parent=1 // pred_check_branch
      %44 = sbr.rel (0) target = $region17
    $region16: #{normed_linear.1} parent=1 // pred_region
      %45 = dma.done [#allocation5], 128
    $region17: #{normed_linear.1} parent=1 // pred_fallthru
      _
    // Predicated region
    $region18: #{normed_linear.1} parent=1 // pred_check
      _
    $region19: #{normed_linear.1} parent=1 // pred_check_branch
      %47 = sbr.rel (0) target = $region21
    $region20: #{normed_linear.1} parent=1 // pred_region
      %48 = dma.done [#allocation8], 2048
    $region21: #{normed_linear.1} parent=1 // pred_fallthru
      _
    // Predicated region
    $region22: #{normed_linear.1} parent=1 // pred_check
      _
    $region23: #{normed_linear.1} parent=1 // pred_check_branch
      %50 = sbr.rel (0) target = $region25
    $region24: #{normed_linear.1} parent=1 // pred_region
      %51 = dma.done [#allocation8], 16
    $region25: #{normed_linear.1} parent=1 // pred_fallthru
      _
    %p52 = scmp.eq.s32.totalorder 0, 0
    // Predicated region
    $region26: #{normed_linear.1} parent=1 // pred_check
      %p53 = pneg %p52
    $region27: #{normed_linear.1} parent=1 // pred_check_branch
      %55 = sbr.rel (%p53) target = $region29
    $region28: #{normed_linear.1} parent=1 // pred_region
      %56 = vst [vmem:[#allocation2] sm:$0xff] 0.0
      %vm57 = vcmask 7168
      %58 = vst.msk [vmem:[#allocation3] sm:$0xff] %vm57, 0.0
    $region29: #{normed_linear.1} parent=1 // pred_fallthru
      _
    %v59 = vld [vmem:[#allocation4] sm:$0xff]
    %v60 = vld [vmem:[#allocation7] sm:$0xff]
    %v61 = vld [vmem:[#allocation7 + $0x8] sm:$0xff]
    %v62 = vld [vmem:[#allocation7 + $0x10] sm:$0xff]
    %v63 = vld [vmem:[#allocation7 + $0x18] sm:$0xff]
    %v64 = vld [vmem:[#allocation7 + $0x20] sm:$0xff]
    %v65 = vld [vmem:[#allocation7 + $0x28] sm:$0xff]
    %v66 = vld [vmem:[#allocation7 + $0x30] sm:$0xff]
    %v67 = vld [vmem:[#allocation7 + $0x38] sm:$0xff]
    %v68 = vld [vmem:[#allocation7 + $0x40] sm:$0xff]
    %v69 = vld [vmem:[#allocation7 + $0x48] sm:$0xff]
    %v70 = vld [vmem:[#allocation7 + $0x50] sm:$0xff]
    %v71 = vld [vmem:[#allocation7 + $0x58] sm:$0xff]
    %v72 = vld [vmem:[#allocation7 + $0x60] sm:$0xff]
    %v73 = vld [vmem:[#allocation7 + $0x68] sm:$0xff]
    %v74 = vld [vmem:[#allocation7 + $0x70] sm:$0xff]
    %v75 = vld [vmem:[#allocation7 + $0x78] sm:$0xff]
    %v76 = vld [vmem:[#allocation2] sm:$0xff]
    %77 = vmatprep.subr.mxu0 0.0
    %78 = vmatpush1.msra.mxu0 %v60
    %79 = vmatprep.subr.mxu0 0.0
    %80 = vmatpush1.msra.mxu0 %v61
    %81 = vmatprep.subr.mxu0 0.0
    %82 = vmatpush1.msra.mxu0 %v62
    %83 = vmatprep.subr.mxu0 0.0
    %84 = vmatpush1.msra.mxu0 %v63
    %85 = vmatprep.subr.mxu0 0.0
    %86 = vmatpush1.msra.mxu0 %v64
    %87 = vmatprep.subr.mxu0 0.0
    %88 = vmatpush1.msra.mxu0 %v65
    %89 = vmatprep.subr.mxu0 0.0
    %90 = vmatpush1.msra.mxu0 %v66
    %91 = vmatprep.subr.mxu0 0.0
    %92 = vmatpush1.msra.mxu0 %v67
    %93 = vmatprep.subr.mxu0 0.0
    %94 = vmatpush1.msra.mxu0 %v68
    %95 = vmatprep.subr.mxu0 0.0
    %96 = vmatpush1.msra.mxu0 %v69
    %97 = vmatprep.subr.mxu0 0.0
    %98 = vmatpush1.msra.mxu0 %v70
    %99 = vmatprep.subr.mxu0 0.0
    %100 = vmatpush1.msra.mxu0 %v71
    %101 = vmatprep.subr.mxu0 0.0
    %102 = vmatpush1.msra.mxu0 %v72
    %103 = vmatprep.subr.mxu0 0.0
    %104 = vmatpush1.msra.mxu0 %v73
    %105 = vmatprep.subr.mxu0 0.0
    %106 = vmatpush1.msra.mxu0 %v74
    %107 = vmatprep.subr.mxu0 0.0
    %108 = vmatpush1.msra.mxu0 %v75
    %109 = vmatprep.subr.mxu0 0.0
    %110 = vmatpush1.msra.mxu0 0.0
    %111 = vmatprep.subr.mxu0 0.0
    %112 = vmatpush1.msra.mxu0 0.0
    %113 = vmatprep.subr.mxu0 0.0
    %114 = vmatpush1.msra.mxu0 0.0
    %115 = vmatprep.subr.mxu0 0.0
    %116 = vmatpush1.msra.mxu0 0.0
    %117 = vmatprep.subr.mxu0 0.0
    %118 = vmatpush1.msra.mxu0 0.0
    %119 = vmatprep.subr.mxu0 0.0
    %120 = vmatpush1.msra.mxu0 0.0
    %121 = vmatprep.subr.mxu0 0.0
    %122 = vmatpush1.msra.mxu0 0.0
    %123 = vmatprep.subr.mxu0 0.0
    %124 = vmatpush1.msra.mxu0 0.0
    %125 = vmatprep.subr.mxu0 0.0
    %126 = vmatpush1.msra.mxu0 0.0
    %127 = vmatprep.subr.mxu0 0.0
    %128 = vmatpush1.msra.mxu0 0.0
    %129 = vmatprep.subr.mxu0 0.0
    %130 = vmatpush1.msra.mxu0 0.0
    %131 = vmatprep.subr.mxu0 0.0
    %132 = vmatpush1.msra.mxu0 0.0
    %133 = vmatprep.subr.mxu0 0.0
    %134 = vmatpush1.msra.mxu0 0.0
    %135 = vmatprep.subr.mxu0 0.0
    %136 = vmatpush1.msra.mxu0 0.0
    %137 = vmatprep.subr.mxu0 0.0
    %138 = vmatpush1.msra.mxu0 0.0
    %139 = vmatprep.subr.mxu0 0.0
    %140 = vmatpush1.msra.mxu0 0.0
    %141 = vmatprep.mubr.f32.mxu0 0.0
    %142 = vmatmul.mubr.f32.gmra.mrb[0].mxu0 %v59
    %v143 = vpop.f32.mrb[0].mxu0
    %v144 = vadd.f32 0.0, %v143
    %v145 = vpop.f32.mrb[0].mxu0
    %146 = vdwg.mxu0
    %v147 = vadd.f32 %v76, %v144
    %148 = vst [vmem:[#allocation2] sm:$0xff] %v147
    %v149 = vld [vmem:[#allocation3] sm:$0xff]
    %v150 = vmul.f32 %v59, %v59
    %151 = vadd.xlane.f32.xlu0 %v150
    %v152 = vpop.xlane.xlu0 %151
    %v153 = vadd.f32 %v149, %v152
    %vm154 = vcmask 7168
    %155 = vst.msk [vmem:[#allocation3] sm:$0xff] %vm154, %v153
    // Predicated region
    $region30: #{normed_linear.1} parent=1 // pred_check
      %p156 = pneg %p52
    $region31: #{normed_linear.1} parent=1 // pred_check_branch
      %158 = sbr.rel (%p156) target = $region33
    $region32: #{normed_linear.1} parent=1 // pred_region
      %v159 = vld [vmem:[#allocation3] sm:$0xff]
      %v160 = vmax.f32 %v159, 1e-24
      %v161 = vrsqrt.pop %v160
      %v162 = vld [vmem:[#allocation2] sm:$0xff]
      %164 = vset.pattern.permute.xlu0 0
      %165 = vperm.xlu0 %164, %v161
      %v166 = vpop.permute.xlu0 %165
      %v168 = vmul.f32 %v162, %v166
      %v169 = vld [vmem:[#allocation9] sm:$0x1]
      %v171 = vlaneseq
      %v172 = vshrl.u32 %v171, 7
      %v173 = vsub.s32 0, %v172
      %v174 = vrot.slane %v169, %v173
      %v176 = vmul.f32 %v168, %v174
      %177 = vst [vmem:[#allocation10] sm:$0xff] %v176
    $region33: #{normed_linear.1} parent=1 // pred_fallthru
      _
    // Predicated region
    $region34: #{normed_linear.1} parent=1 // pred_check
      _
    $region35: #{normed_linear.1} parent=1 // pred_check_branch
      %179 = sbr.rel (0) target = $region37
    $region36: #{normed_linear.1} parent=1 // pred_region
      %s181 = ssub.s32 128, 128
      %182 = vsyncadd [#allocation6], %s181
      %s184 = sshll.u32 [#allocation10], 4
      %s185 = int_to_ptr.vmem [resolvable:$true] %s184
      %187 = dma.vmem_to_hbm [thread:$0]  %s185, 128, %s3, [#allocation6]
    $region37: #{normed_linear.1} parent=1 // pred_fallthru
      _
    // Predicated region
    $region38: #{normed_linear.1} parent=1 // pred_check
      _
    $region39: #{normed_linear.1} parent=1 // pred_check_branch
      %189 = sbr.rel (0) target = $region41
    $region40: #{normed_linear.1} parent=1 // pred_region
      %190 = dma.done [#allocation6], 128
    $region41: #{normed_linear.1} parent=1 // pred_fallthru
      _
    %191 = vsyncpa [#allocation5], 1
    %192 = vsyncpa [#allocation8], 1
    %193 = vsyncpa [#allocation6], 1

</llo_original>
